<compile_context>
chip_gen: v7x
topology: tpu7x:2x2x1
jax: 0.10.0
libtpu: 0.0.40
codegen_flags: <defaults>
</compile_context>

<pallas_src>
import functools

import numpy as np
import jax
import jax.numpy as jnp
from jax.experimental import pallas as pl
from jax.experimental.pallas import tpu as pltpu


def _round_up(x, m):
    return ((x + m - 1) // m) * m


_ROW_TILE_CANDIDATES = (512, 256, 128, 64, 32, 16, 8)


def _choose_row_tiling(rows, max_tile=512):
    """Pick (TR, RP) minimizing padded-row waste; on ties prefer a grid with
    >=2 steps (megacore-shardable on v7x), then the largest tile."""
    best = None
    for t in _ROW_TILE_CANDIDATES:
        if t > max_tile:
            continue
        rp = _round_up(rows, t)
        key = (rp - rows, 0 if rp // t >= 2 else 1, -t)
        if best is None or key < best[0]:
            best = (key, t, rp)
    _, tr, rp = best
    return tr, rp


def _choose_slab_rows(tr, lp, budget_bytes=32 * 1024):
    """Largest power-of-two slab dividing TR whose f32 footprint (~3 live
    copies: x, x_rem, matmul result) fits comfortably in the vreg file."""
    for s in (128, 64, 32, 16, 8):
        if s <= tr and tr % s == 0 and s * lp * 4 <= budget_bytes:
            return s
    return min(tr, 8)


# ----------------------------- Pallas kernel ------------------------------ #
def _decomp_kernel(x_ref, circ_ref, q_ref, o_ref, *, seasons, slab_rows):
    # x_ref    : (TR, LP)            f32   row tile of the flattened series
    # circ_ref : (seasons, LP, LP)   bf16  per-season circulant operators
    # q_ref    : (LP, LP)            bf16  Q = I - P^T (trend fold)
    mm_dtype = circ_ref.dtype
    n_slabs = x_ref.shape[0] // slab_rows

    def process(x_slab):
        # x_slab stays in vregs for the whole season chain (no VMEM round trip).
        x_rem = x_slab
        for s in range(seasons):                       # small static unroll
            seasonal = jnp.tanh(                       # f32 tanh (EUP); v5e-safe
                jnp.dot(x_rem.astype(mm_dtype), circ_ref[s],
                        preferred_element_type=jnp.float32))   # MXU, f32 acc
            x_rem = x_rem - seasonal                   # f32 VPU
        # out = x - x_rem + x_rem @ P^T = x - x_rem @ (I - P^T) = x - x_rem @ Q
        return x_slab - jnp.dot(x_rem.astype(mm_dtype), q_ref[...],
                                preferred_element_type=jnp.float32)

    if n_slabs == 1:
        o_ref[...] = process(x_ref[...]).astype(o_ref.dtype)
    else:
        # Unrolled slab loop: bounds the live f32 residual to one slab and lets
        # the MXU matmul of slab i+1 overlap the EUP tanh of slab i.
        def slab(i, carry):
            r0 = pl.multiple_of(i * slab_rows, slab_rows)
            rows = pl.ds(r0, slab_rows)
            o_ref[rows, :] = process(x_ref[rows, :]).astype(o_ref.dtype)
            return carry

        jax.lax.fori_loop(0, n_slabs, slab, 0, unroll=True)


def _vmem_limit_bytes():
    """~75% of physical VMEM, capped at 96 MiB (v5e/v6e: 96 MiB, v7x: ~48 MiB)."""
    try:
        cap = int(pltpu.get_tpu_info().vmem_capacity_bytes)
    except Exception:
        cap = 64 * 1024 * 1024
    return min(int(cap * 3 // 4), 96 * 1024 * 1024)


def decomp_block_forward(x, circ_p, q_p, *, seq_len, row_tile=512):
    """x: (B, C, L) f32.  circ_p: (seasons, LP, LP), q_p: (LP, LP) — padded,
    matmul-dtype operators built once by build_decomp_params()."""
    B, C, L = x.shape
    assert L == seq_len
    seasons, LP, _ = circ_p.shape
    R = B * C

    TR, RP = _choose_row_tiling(R, max_tile=row_tile)
    slab_rows = _choose_slab_rows(TR, LP)

    # Per-call work on x only: one jnp.pad (no zeros + dynamic-update-slice).
    x2 = jnp.pad(x.reshape(R, L).astype(jnp.float32),
                 ((0, RP - R), (0, LP - L)))

    kernel = functools.partial(_decomp_kernel, seasons=seasons,
                               slab_rows=slab_rows)

    def _call(single_buffer_ops):
        # Grid-invariant operators stay resident in VMEM; single-buffer them so
        # the (seasons+1) x (LP,LP) stack is not held twice (matters on v7x).
        op_kwargs = dict(pipeline_mode=pl.Buffered(1)) if single_buffer_ops else {}
        return pl.pallas_call(
            kernel,
            out_shape=jax.ShapeDtypeStruct((RP, LP), jnp.float32),
            grid=(RP // TR,),
            in_specs=[
                pl.BlockSpec((TR, LP), lambda i: (i, 0)),                       # streamed
                pl.BlockSpec((seasons, LP, LP), lambda i: (0, 0, 0), **op_kwargs),
                pl.BlockSpec((LP, LP), lambda i: (0, 0), **op_kwargs),
            ],
            out_specs=pl.BlockSpec((TR, LP), lambda i: (i, 0)),
            compiler_params=pltpu.CompilerParams(
                dimension_semantics=("parallel",),       # megacore-shard rows on v7x
                vmem_limit_bytes=_vmem_limit_bytes(),
            ),
        )(x2, circ_p, q_p)

    use_single_buffer = hasattr(pl, "Buffered")
    try:
        out = _call(use_single_buffer)
    except Exception:
        if not use_single_buffer:
            raise
        out = _call(False)   # fallback if Buffered(1) unsupported on this backend

    return out[:R, :L].reshape(B, C, L)


# ------------------------- parameter construction ------------------------- #
def _fourier_basis_real_imag(N):
    """Real/imag parts of the normalized DFT matrix F[j,k]=exp(-2pi i jk/N)/sqrt(N)."""
    j = np.arange(N).reshape(-1, 1).astype(np.float64)
    k = np.arange(N).reshape(1, -1).astype(np.float64)
    ang = -2.0 * np.pi * j * k / N
    scale = 1.0 / np.sqrt(np.float32(N))
    return (scale * np.cos(ang)).astype(np.float32), (scale * np.sin(ang)).astype(np.float32)


def make_circulants(seq_len, seasons, diagonals):
    """Real part of F^H diag(d) F for each season's DFT sub-block."""
    Fr_big, Fi_big = _fourier_basis_real_imag(seq_len * seasons)
    circs = []
    for i in range(seasons):
        sl = slice(i * seq_len, (i + 1) * seq_len)
        Fr = Fr_big[sl, sl]
        Fi = Fi_big[sl, sl]
        d = np.asarray(diagonals[i], dtype=np.float32)
        # Re(F^H D F) = Fr^T (d * Fr) + Fi^T (d * Fi)   (d real)
        C = Fr.T @ (d[:, None] * Fr) + Fi.T @ (d[:, None] * Fi)
        circs.append(C.astype(np.float32))
    return np.stack(circs)  # (seasons, L, L)


def make_pool_matrix(seq_len, kernel_size):
    """P with trend = x @ P^T: AvgPool1d(k, stride=1) after replicating x[0]
    (k-1) times at the front.  Built in float64."""
    P = np.zeros((seq_len, seq_len), np.float64)
    for t in range(seq_len):
        for j in range(t - kernel_size + 1, t + 1):
            P[t, max(j, 0)] += 1.0 / kernel_size
    return P


def make_q_matrix(seq_len, kernel_size):
    """Q = I - P^T so that  x - x_rem + x_rem @ P^T == x - x_rem @ Q
    (built in f64, single cast to f32; one bf16 cast happens at init)."""
    P = make_pool_matrix(seq_len, kernel_size)
    return (np.eye(seq_len, dtype=np.float64) - P.T).astype(np.float32)


def build_decomp_params(seq_len, seasons, trend_kernel_size, diagonals,
                        matmul_dtype=jnp.bfloat16):
    """Init-time (module-buffer-like) construction: pad to a lane multiple of
    128 and cast to the matmul dtype ONCE; reused for every forward call."""
    L = seq_len
    LP = _round_up(L, 128)
    circ = make_circulants(L, seasons, diagonals)
    q = make_q_matrix(L, trend_kernel_size)
    circ_p = np.zeros((seasons, LP, LP), np.float32)
    circ_p[:, :L, :L] = circ
    q_p = np.zeros((LP, LP), np.float32)
    q_p[:L, :L] = q
    return (jnp.asarray(circ_p, dtype=matmul_dtype),
            jnp.asarray(q_p, dtype=matmul_dtype))


# ------------------------------ reference --------------------------------- #
def reference(x, circulants, q, matmul_dtype=jnp.float32):
    """Pure-JAX reference of the DecompBlock forward with the same trend fold
    and the same matmul-operand dtype policy as the kernel."""
    B, C, L = x.shape
    x2 = x.reshape(B * C, L).astype(jnp.float32)
    x_rem = x2
    for s in range(circulants.shape[0]):
        seasonal = jnp.tanh(
            jnp.dot(x_rem.astype(matmul_dtype), circulants[s].astype(matmul_dtype),
                    preferred_element_type=jnp.float32))
        x_rem = x_rem - seasonal
    out = x2 - jnp.dot(x_rem.astype(matmul_dtype), q.astype(matmul_dtype),
                       preferred_element_type=jnp.float32)
    return out.reshape(B, C, L)


# --------------------------------- main ------------------------------------ #
if __name__ == "__main__":
    B, C, L = 2, 4, 16          # [batch, channels, seq_len]
    seasons = 3
    trend_kernel_size = 5
    matmul_dtype = jnp.bfloat16   # MXU-native operands; all accumulation in f32

    key = jax.random.PRNGKey(0)
    kx, kd = jax.random.split(key)
    x = jax.random.normal(kx, (B, C, L), dtype=jnp.float32)

    # nn.init.uniform_(torch.empty(seq_len), a=-1, b=1) for each Seasonal module.
    diag_keys = jax.random.split(kd, seasons)
    diagonals = [
        np.asarray(jax.random.uniform(k_, (L,), minval=-1.0, maxval=1.0,
                                      dtype=jnp.float32))
        for k_ in diag_keys
    ]

    # Build padded + bf16 operators once (module buffers), not per forward call.
    circ_p, q_p = build_decomp_params(L, seasons, trend_kernel_size, diagonals,
                                      matmul_dtype=matmul_dtype)

    out = decomp_block_forward(x, circ_p, q_p, seq_len=L)
    out = jax.block_until_ready(out)

    # Check vs. a pure-JAX reference using the same bf16-operand / f32-acc
    # policy.  (vs. a pure-f32 PyTorch module the bf16 operator cast gives
    # ~1e-3-level differences, as noted in the review.)
    circ_ref = jnp.asarray(make_circulants(L, seasons, diagonals))
    q_ref = jnp.asarray(make_q_matrix(L, trend_kernel_size))
    ref = reference(x, circ_ref, q_ref, matmul_dtype=matmul_dtype)
    np.testing.assert_allclose(np.asarray(out), np.asarray(ref), rtol=1e-4, atol=1e-4)

    print("KERNEL_OK")
</pallas_src>

<mosaic_0001>
module attributes {stable_mosaic.version = 11 : i64} {
  func.func @_decomp_kernel(%arg0: i32, %arg1: memref<8x128xf32, #tpu.memory_space<vmem>>, %arg2: memref<3x128x128xbf16, #tpu.memory_space<vmem>>, %arg3: memref<128x128xbf16, #tpu.memory_space<vmem>>, %arg4: memref<8x128xf32, #tpu.memory_space<vmem>>) attributes {dimension_semantics = [#tpu.dimension_semantics<parallel>], iteration_bounds = array<i64: 1>, scalar_prefetch = 0 : i64, scratch_operands = 0 : i64, tpu.core_type = #tpu.core_type<tc>, window_params = [{transform_indices = @transform_0, window_bounds = array<i64: 8, 128>}, {pipeline_mode = #tpu.pipeline_mode<synchronous>, transform_indices = @transform_1, window_bounds = array<i64: 3, 128, 128>}, {pipeline_mode = #tpu.pipeline_mode<synchronous>, transform_indices = @transform_2, window_bounds = array<i64: 128, 128>}, {transform_indices = @transform_3, window_bounds = array<i64: 8, 128>}]} {
    %c0 = arith.constant 0 : index
    %c0_0 = arith.constant 0 : index
    %0 = vector.load %arg1[%c0, %c0_0] : memref<8x128xf32, #tpu.memory_space<vmem>>, vector<8x128xf32>
    %1 = arith.truncf %0 : vector<8x128xf32> to vector<8x128xbf16>
    %c0_1 = arith.constant 0 : index
    %c0_2 = arith.constant 0 : index
    %c0_3 = arith.constant 0 : index
    %2 = vector.load %arg2[%c0_1, %c0_2, %c0_3] : memref<3x128x128xbf16, #tpu.memory_space<vmem>>, vector<1x128x128xbf16>
    %3 = vector.shape_cast %2 : vector<1x128x128xbf16> to vector<128x128xbf16>
    %cst = arith.constant dense<0.000000e+00> : vector<8x128xf32>
    %4 = tpu.matmul %1, %3, %cst {dimension_numbers = #tpu.dot_dimension_numbers<[1], [0], [0], [1], [0, 0, 1, 1], [], []>} : vector<8x128xbf16>, vector<128x128xbf16>, vector<8x128xf32> -> vector<8x128xf32>
    %5 = math.tanh %4 : vector<8x128xf32>
    %6 = arith.subf %0, %5 : vector<8x128xf32>
    %7 = arith.truncf %6 : vector<8x128xf32> to vector<8x128xbf16>
    %c1 = arith.constant 1 : index
    %c0_4 = arith.constant 0 : index
    %c0_5 = arith.constant 0 : index
    %8 = vector.load %arg2[%c1, %c0_4, %c0_5] : memref<3x128x128xbf16, #tpu.memory_space<vmem>>, vector<1x128x128xbf16>
    %9 = vector.shape_cast %8 : vector<1x128x128xbf16> to vector<128x128xbf16>
    %cst_6 = arith.constant dense<0.000000e+00> : vector<8x128xf32>
    %10 = tpu.matmul %7, %9, %cst_6 {dimension_numbers = #tpu.dot_dimension_numbers<[1], [0], [0], [1], [0, 0, 1, 1], [], []>} : vector<8x128xbf16>, vector<128x128xbf16>, vector<8x128xf32> -> vector<8x128xf32>
    %11 = math.tanh %10 : vector<8x128xf32>
    %12 = arith.subf %6, %11 : vector<8x128xf32>
    %13 = arith.truncf %12 : vector<8x128xf32> to vector<8x128xbf16>
    %c2 = arith.constant 2 : index
    %c0_7 = arith.constant 0 : index
    %c0_8 = arith.constant 0 : index
    %14 = vector.load %arg2[%c2, %c0_7, %c0_8] : memref<3x128x128xbf16, #tpu.memory_space<vmem>>, vector<1x128x128xbf16>
    %15 = vector.shape_cast %14 : vector<1x128x128xbf16> to vector<128x128xbf16>
    %cst_9 = arith.constant dense<0.000000e+00> : vector<8x128xf32>
    %16 = tpu.matmul %13, %15, %cst_9 {dimension_numbers = #tpu.dot_dimension_numbers<[1], [0], [0], [1], [0, 0, 1, 1], [], []>} : vector<8x128xbf16>, vector<128x128xbf16>, vector<8x128xf32> -> vector<8x128xf32>
    %17 = math.tanh %16 : vector<8x128xf32>
    %18 = arith.subf %12, %17 : vector<8x128xf32>
    %19 = arith.truncf %18 : vector<8x128xf32> to vector<8x128xbf16>
    %c0_10 = arith.constant 0 : index
    %c0_11 = arith.constant 0 : index
    %20 = vector.load %arg3[%c0_10, %c0_11] : memref<128x128xbf16, #tpu.memory_space<vmem>>, vector<128x128xbf16>
    %cst_12 = arith.constant dense<0.000000e+00> : vector<8x128xf32>
    %21 = tpu.matmul %19, %20, %cst_12 {dimension_numbers = #tpu.dot_dimension_numbers<[1], [0], [0], [1], [0, 0, 1, 1], [], []>} : vector<8x128xbf16>, vector<128x128xbf16>, vector<8x128xf32> -> vector<8x128xf32>
    %22 = arith.subf %0, %21 : vector<8x128xf32>
    %c0_13 = arith.constant 0 : index
    %c0_14 = arith.constant 0 : index
    %23 = vector.load %arg4[%c0_13, %c0_14] : memref<8x128xf32, #tpu.memory_space<vmem>>, vector<8x128xf32>
    tpu.vector_store %arg4[%c0_13, %c0_14], %22 {strides = array<i32>} : memref<8x128xf32, #tpu.memory_space<vmem>>, vector<8x128xf32>,
    return
  }
  func.func @transform_0(%arg0: i32) -> (i32, i32) {
    %c0_i32 = arith.constant 0 : i32
    %c0_i32_0 = arith.constant 0 : i32
    return %arg0, %c0_i32 : i32, i32
  }
  func.func @transform_1(%arg0: i32) -> (i32, i32, i32) {
    %c0_i32 = arith.constant 0 : i32
    %c0_i32_0 = arith.constant 0 : i32
    %c0_i32_1 = arith.constant 0 : i32
    %c0_i32_2 = arith.constant 0 : i32
    return %c0_i32, %c0_i32_0, %c0_i32_1 : i32, i32, i32
  }
  func.func @transform_2(%arg0: i32) -> (i32, i32) {
    %c0_i32 = arith.constant 0 : i32
    %c0_i32_0 = arith.constant 0 : i32
    %c0_i32_1 = arith.constant 0 : i32
    return %c0_i32, %c0_i32_0 : i32, i32
  }
  func.func @transform_3(%arg0: i32) -> (i32, i32) {
    %c0_i32 = arith.constant 0 : i32
    %c0_i32_0 = arith.constant 0 : i32
    return %arg0, %c0_i32 : i32, i32
  }
}

module attributes {stable_mosaic.version = 11 : i64} {
  func.func @_decomp_kernel(%arg0: i32, %arg1: memref<8x128xf32, #tpu.memory_space<vmem>>, %arg2: memref<3x128x128xbf16, #tpu.memory_space<vmem>>, %arg3: memref<128x128xbf16, #tpu.memory_space<vmem>>, %arg4: memref<8x128xf32, #tpu.memory_space<vmem>>) attributes {dimension_semantics = [#tpu.dimension_semantics<parallel>], iteration_bounds = array<i64: 1>, scalar_prefetch = 0 : i64, scratch_operands = 0 : i64, tpu.core_type = #tpu.core_type<tc>, window_params = [{transform_indices = @transform_0, window_bounds = array<i64: 8, 128>}, {pipeline_mode = #tpu.pipeline_mode<synchronous>, transform_indices = @transform_1, window_bounds = array<i64: 3, 128, 128>}, {pipeline_mode = #tpu.pipeline_mode<synchronous>, transform_indices = @transform_2, window_bounds = array<i64: 128, 128>}, {transform_indices = @transform_3, window_bounds = array<i64: 8, 128>}]} {
    %c0 = arith.constant 0 : index
    %c0_0 = arith.constant 0 : index
    %0 = vector.load %arg1[%c0, %c0_0] : memref<8x128xf32, #tpu.memory_space<vmem>>, vector<8x128xf32>
    %1 = arith.truncf %0 : vector<8x128xf32> to vector<8x128xbf16>
    %c0_1 = arith.constant 0 : index
    %c0_2 = arith.constant 0 : index
    %c0_3 = arith.constant 0 : index
    %2 = vector.load %arg2[%c0_1, %c0_2, %c0_3] : memref<3x128x128xbf16, #tpu.memory_space<vmem>>, vector<1x128x128xbf16>
    %3 = vector.shape_cast %2 : vector<1x128x128xbf16> to vector<128x128xbf16>
    %cst = arith.constant dense<0.000000e+00> : vector<8x128xf32>
    %4 = tpu.matmul %1, %3, %cst {dimension_numbers = #tpu.dot_dimension_numbers<[1], [0], [0], [1], [0, 0, 1, 1], [], []>} : vector<8x128xbf16>, vector<128x128xbf16>, vector<8x128xf32> -> vector<8x128xf32>
    %5 = math.tanh %4 : vector<8x128xf32>
    %6 = arith.subf %0, %5 : vector<8x128xf32>
    %7 = arith.truncf %6 : vector<8x128xf32> to vector<8x128xbf16>
    %c1 = arith.constant 1 : index
    %c0_4 = arith.constant 0 : index
    %c0_5 = arith.constant 0 : index
    %8 = vector.load %arg2[%c1, %c0_4, %c0_5] : memref<3x128x128xbf16, #tpu.memory_space<vmem>>, vector<1x128x128xbf16>
    %9 = vector.shape_cast %8 : vector<1x128x128xbf16> to vector<128x128xbf16>
    %cst_6 = arith.constant dense<0.000000e+00> : vector<8x128xf32>
    %10 = tpu.matmul %7, %9, %cst_6 {dimension_numbers = #tpu.dot_dimension_numbers<[1], [0], [0], [1], [0, 0, 1, 1], [], []>} : vector<8x128xbf16>, vector<128x128xbf16>, vector<8x128xf32> -> vector<8x128xf32>
    %11 = math.tanh %10 : vector<8x128xf32>
    %12 = arith.subf %6, %11 : vector<8x128xf32>
    %13 = arith.truncf %12 : vector<8x128xf32> to vector<8x128xbf16>
    %c2 = arith.constant 2 : index
    %c0_7 = arith.constant 0 : index
    %c0_8 = arith.constant 0 : index
    %14 = vector.load %arg2[%c2, %c0_7, %c0_8] : memref<3x128x128xbf16, #tpu.memory_space<vmem>>, vector<1x128x128xbf16>
    %15 = vector.shape_cast %14 : vector<1x128x128xbf16> to vector<128x128xbf16>
    %cst_9 = arith.constant dense<0.000000e+00> : vector<8x128xf32>
    %16 = tpu.matmul %13, %15, %cst_9 {dimension_numbers = #tpu.dot_dimension_numbers<[1], [0], [0], [1], [0, 0, 1, 1], [], []>} : vector<8x128xbf16>, vector<128x128xbf16>, vector<8x128xf32> -> vector<8x128xf32>
    %17 = math.tanh %16 : vector<8x128xf32>
    %18 = arith.subf %12, %17 : vector<8x128xf32>
    %19 = arith.truncf %18 : vector<8x128xf32> to vector<8x128xbf16>
    %c0_10 = arith.constant 0 : index
    %c0_11 = arith.constant 0 : index
    %20 = vector.load %arg3[%c0_10, %c0_11] : memref<128x128xbf16, #tpu.memory_space<vmem>>, vector<128x128xbf16>
    %cst_12 = arith.constant dense<0.000000e+00> : vector<8x128xf32>
    %21 = tpu.matmul %19, %20, %cst_12 {dimension_numbers = #tpu.dot_dimension_numbers<[1], [0], [0], [1], [0, 0, 1, 1], [], []>} : vector<8x128xbf16>, vector<128x128xbf16>, vector<8x128xf32> -> vector<8x128xf32>
    %22 = arith.subf %0, %21 : vector<8x128xf32>
    %c0_13 = arith.constant 0 : index
    %c0_14 = arith.constant 0 : index
    %23 = vector.load %arg4[%c0_13, %c0_14] : memref<8x128xf32, #tpu.memory_space<vmem>>, vector<8x128xf32>
    tpu.vector_store %arg4[%c0_13, %c0_14], %22 {strides = array<i32>} : memref<8x128xf32, #tpu.memory_space<vmem>>, vector<8x128xf32>,
    return
  }
  func.func @transform_0(%arg0: i32) -> (i32, i32) {
    %c0_i32 = arith.constant 0 : i32
    %c0_i32_0 = arith.constant 0 : i32
    return %arg0, %c0_i32 : i32, i32
  }
  func.func @transform_1(%arg0: i32) -> (i32, i32, i32) {
    %c0_i32 = arith.constant 0 : i32
    %c0_i32_0 = arith.constant 0 : i32
    %c0_i32_1 = arith.constant 0 : i32
    %c0_i32_2 = arith.constant 0 : i32
    return %c0_i32, %c0_i32_0, %c0_i32_1 : i32, i32, i32
  }
  func.func @transform_2(%arg0: i32) -> (i32, i32) {
    %c0_i32 = arith.constant 0 : i32
    %c0_i32_0 = arith.constant 0 : i32
    %c0_i32_1 = arith.constant 0 : i32
    return %c0_i32, %c0_i32_0 : i32, i32
  }
  func.func @transform_3(%arg0: i32) -> (i32, i32) {
    %c0_i32 = arith.constant 0 : i32
    %c0_i32_0 = arith.constant 0 : i32
    return %arg0, %c0_i32 : i32, i32
  }
}

</mosaic_0001>

<llo_original>
// kernel: tpu_custom_call.1
$region0: #{tpu_custom_call.1}
  #allocation0 [shape = 'u32[]', space=smem, size = 0x4, offset = 0x4, fixed_abs, tag = 'smem constant byte address 0x4 - core index']
  #allocation1 [shape = 'u32[144,128]{1,0:T(1,128)}', space=vmem, size = 0x12000, scoped, tag = 'internal scratch']
  %s0 = inlined_call_operand.hbm [shape: f32[8,128], index: 0, kind: input, shape index: {}]
  %s1 = inlined_call_operand.hbm [shape: bf16[3,128,128], index: 1, kind: input, shape index: {}]
  %s2 = inlined_call_operand.hbm [shape: bf16[128,128], index: 2, kind: input, shape index: {}]
  %s3 = inlined_call_operand.hbm [shape: f32[8,128], index: 3, kind: output, shape index: {}]
  %s4 = sld [smem:[#allocation0]]
  $region34: #{tpu_custom_call.1} parent=0
    _
  %s6 = ssub.s32 1, %s4
  %s7 = scalar_select 0, %s6, %s4
  $region1: #{tpu_custom_call.1} parent=0
    #allocation2 [shape = 'u8[4096]{0}', space=vmem, size = 0x1000, scoped, tag = 'input window, operand 0, single buffered']
    #allocation3 [shape = 's32[1]{0}', space=sflag, size = 0x4, scoped, tag = 'scoped memory for tpu_custom_call.1']
    #allocation4 [shape = 's32[1]{0}', space=sflag, size = 0x4, scoped, tag = 'scoped memory for tpu_custom_call.1']
    #allocation5 [shape = 'u8[98304]{0}', space=vmem, size = 0x18000, scoped, tag = 'input window, operand 1, single buffered']
    #allocation6 [shape = 's32[1]{0}', space=sflag, size = 0x4, scoped, tag = 'scoped memory for tpu_custom_call.1']
    #allocation7 [shape = 'u8[32768]{0}', space=vmem, size = 0x8000, scoped, tag = 'input window, operand 2, single buffered']
    #allocation8 [shape = 'u8[4096]{0}', space=vmem, size = 0x1000, scoped, tag = 'output window, operand 0, single buffered']
    %8 = vsyncpa [#allocation3], 0
    %9 = vsyncpa [#allocation6], 0
    %10 = vsyncpa [#allocation4], 0
    // Predicated region
    $region2: #{tpu_custom_call.1} parent=1 // pred_check
      _
    $region3: #{tpu_custom_call.1} parent=1 // pred_check_branch
      %12 = sbr.rel (0) target = $region5
    $region4: #{tpu_custom_call.1} parent=1 // pred_region
      %s14 = ssub.s32 128, 128
      %15 = vsyncadd [#allocation3], %s14
      %s17 = sshll.u32 [#allocation2], 4
      %s18 = int_to_ptr.vmem [resolvable:$true] %s17
      %20 = dma.hbm_to_vmem [thread:$0]  %s0, 128, %s18, [#allocation3]
    $region5: #{tpu_custom_call.1} parent=1 // pred_fallthru
      _
    // Predicated region
    $region6: #{tpu_custom_call.1} parent=1 // pred_check
      _
    $region7: #{tpu_custom_call.1} parent=1 // pred_check_branch
      %22 = sbr.rel (0) target = $region9
    $region8: #{tpu_custom_call.1} parent=1 // pred_region
      %s24 = ssub.s32 3072, 3072
      %25 = vsyncadd [#allocation6], %s24
      %s26 = sshll.u32 [#allocation5], 4
      %s27 = int_to_ptr.vmem [resolvable:$true] %s26
      %32 = dma.hbm_to_vmem [thread:$0]  %s1, 3072, %s27, [#allocation6], 64, 64, 4
    $region9: #{tpu_custom_call.1} parent=1 // pred_fallthru
      _
    // Predicated region
    $region10: #{tpu_custom_call.1} parent=1 // pred_check
      _
    $region11: #{tpu_custom_call.1} parent=1 // pred_check_branch
      %34 = sbr.rel (0) target = $region13
    $region12: #{tpu_custom_call.1} parent=1 // pred_region
      %s36 = ssub.s32 1024, 1024
      %37 = vsyncadd [#allocation6], %s36
      %s38 = sshll.u32 [#allocation7], 4
      %s39 = int_to_ptr.vmem [resolvable:$true] %s38
      %44 = dma.hbm_to_vmem [thread:$0]  %s2, 1024, %s39, [#allocation6], 64, 64, 4
    $region13: #{tpu_custom_call.1} parent=1 // pred_fallthru
      _
    // Predicated region
    $region14: #{tpu_custom_call.1} parent=1 // pred_check
      _
    $region15: #{tpu_custom_call.1} parent=1 // pred_check_branch
      %46 = sbr.rel (0) target = $region17
    $region16: #{tpu_custom_call.1} parent=1 // pred_region
      %47 = dma.done [#allocation3], 128
    $region17: #{tpu_custom_call.1} parent=1 // pred_fallthru
      _
    // Predicated region
    $region18: #{tpu_custom_call.1} parent=1 // pred_check
      _
    $region19: #{tpu_custom_call.1} parent=1 // pred_check_branch
      %49 = sbr.rel (0) target = $region21
    $region20: #{tpu_custom_call.1} parent=1 // pred_region
      %50 = dma.done [#allocation6], 3072
    $region21: #{tpu_custom_call.1} parent=1 // pred_fallthru
      _
    // Predicated region
    $region22: #{tpu_custom_call.1} parent=1 // pred_check
      _
    $region23: #{tpu_custom_call.1} parent=1 // pred_check_branch
      %52 = sbr.rel (0) target = $region25
    $region24: #{tpu_custom_call.1} parent=1 // pred_region
      %53 = dma.done [#allocation6], 1024
    $region25: #{tpu_custom_call.1} parent=1 // pred_fallthru
      _
    %v55 = vld [vmem:[#allocation2] sm:$0xff]
    %v56 = vpack.c.bf16 %v55, %v55
    %v57 = vld [vmem:[#allocation5] sm:$0xf]
    %v58 = vld [vmem:[#allocation5 + $0x4] sm:$0xf]
    %v59 = vld [vmem:[#allocation5 + $0x8] sm:$0xf]
    %v60 = vld [vmem:[#allocation5 + $0xc] sm:$0xf]
    %v61 = vld [vmem:[#allocation5 + $0x10] sm:$0xf]
    %v62 = vld [vmem:[#allocation5 + $0x14] sm:$0xf]
    %v63 = vld [vmem:[#allocation5 + $0x18] sm:$0xf]
    %v64 = vld [vmem:[#allocation5 + $0x1c] sm:$0xf]
    %v65 = vld [vmem:[#allocation5 + $0x20] sm:$0xf]
    %v66 = vld [vmem:[#allocation5 + $0x24] sm:$0xf]
    %v67 = vld [vmem:[#allocation5 + $0x28] sm:$0xf]
    %v68 = vld [vmem:[#allocation5 + $0x2c] sm:$0xf]
    %v69 = vld [vmem:[#allocation5 + $0x30] sm:$0xf]
    %v70 = vld [vmem:[#allocation5 + $0x34] sm:$0xf]
    %v71 = vld [vmem:[#allocation5 + $0x38] sm:$0xf]
    %v72 = vld [vmem:[#allocation5 + $0x3c] sm:$0xf]
    %v89 = vunpack.c.l.b16 %v57
    %v90 = vunpack.c.l.b16 %v58
    %v91 = vunpack.c.l.b16 %v59
    %v92 = vunpack.c.l.b16 %v60
    %v93 = vunpack.c.l.b16 %v61
    %v94 = vunpack.c.l.b16 %v62
    %v95 = vunpack.c.l.b16 %v63
    %v96 = vunpack.c.l.b16 %v64
    %v97 = vunpack.c.l.b16 %v65
    %v98 = vunpack.c.l.b16 %v66
    %v99 = vunpack.c.l.b16 %v67
    %v100 = vunpack.c.l.b16 %v68
    %v101 = vunpack.c.l.b16 %v69
    %v102 = vunpack.c.l.b16 %v70
    %v103 = vunpack.c.l.b16 %v71
    %v104 = vunpack.c.l.b16 %v72
    %v105 = vpack.c.b16 %v90, %v89
    %v106 = vpack.c.b16 %v92, %v91
    %v107 = vpack.c.b16 %v94, %v93
    %v108 = vpack.c.b16 %v96, %v95
    %v109 = vpack.c.b16 %v98, %v97
    %v110 = vpack.c.b16 %v100, %v99
    %v111 = vpack.c.b16 %v102, %v101
    %v112 = vpack.c.b16 %v104, %v103
    %121 = vmatprep.subr.bf16.mxu0 0
    %122 = vmatpush1.bf16.msra.mxu0 %v105
    %123 = vmatprep.subr.bf16.mxu0 0
    %124 = vmatpush1.bf16.msra.mxu0 %v106
    %125 = vmatprep.subr.bf16.mxu0 0
    %126 = vmatpush1.bf16.msra.mxu0 %v107
    %127 = vmatprep.subr.bf16.mxu0 0
    %128 = vmatpush1.bf16.msra.mxu0 %v108
    %129 = vmatprep.subr.bf16.mxu0 0
    %130 = vmatpush1.bf16.msra.mxu0 %v109
    %131 = vmatprep.subr.bf16.mxu0 0
    %132 = vmatpush1.bf16.msra.mxu0 %v110
    %133 = vmatprep.subr.bf16.mxu0 0
    %134 = vmatpush1.bf16.msra.mxu0 %v111
    %135 = vmatprep.subr.bf16.mxu0 0
    %136 = vmatpush1.bf16.msra.mxu0 %v112
    %137 = vmatprep.subr.bf16.mxu0 0
    %138 = vmatpush1.bf16.msra.mxu0 0
    %139 = vmatprep.subr.bf16.mxu0 0
    %140 = vmatpush1.bf16.msra.mxu0 0
    %141 = vmatprep.subr.bf16.mxu0 0
    %142 = vmatpush1.bf16.msra.mxu0 0
    %143 = vmatprep.subr.bf16.mxu0 0
    %144 = vmatpush1.bf16.msra.mxu0 0
    %145 = vmatprep.subr.bf16.mxu0 0
    %146 = vmatpush1.bf16.msra.mxu0 0
    %147 = vmatprep.subr.bf16.mxu0 0
    %148 = vmatpush1.bf16.msra.mxu0 0
    %149 = vmatprep.subr.bf16.mxu0 0
    %150 = vmatpush1.bf16.msra.mxu0 0
    %151 = vmatprep.subr.bf16.mxu0 0
    %152 = vmatpush1.bf16.msra.mxu0 0
    %153 = vmatprep.mubr.bf16.mxu0 0
    %154 = vmatmul.mubr.bf16.gmra.mrb[0].mxu0 %v56
    %v155 = vpop.f32.mrb[0].mxu0
    %v156 = vadd.f32 0.0, %v155
    %v157 = vpop.f32.mrb[0].mxu0
    %v158 = vpop.f32.mrb[0].mxu0
    %v159 = vpop.f32.mrb[0].mxu0
    %160 = vdwg.mxu0
    %v161 = vtanh.pop %v156
    %v162 = vsub.f32 %v55, %v161
    %v163 = vpack.c.bf16 %v162, %v162
    %s164 = scalar_lea.vmem [#allocation5], 64
    %v165 = vld [vmem:[%s164] sm:$0xf]
    %v166 = vld [vmem:[%s164 + $0x4] sm:$0xf]
    %v167 = vld [vmem:[%s164 + $0x8] sm:$0xf]
    %v168 = vld [vmem:[%s164 + $0xc] sm:$0xf]
    %v169 = vld [vmem:[%s164 + $0x10] sm:$0xf]
    %v170 = vld [vmem:[%s164 + $0x14] sm:$0xf]
    %v171 = vld [vmem:[%s164 + $0x18] sm:$0xf]
    %v172 = vld [vmem:[%s164 + $0x1c] sm:$0xf]
    %v173 = vld [vmem:[%s164 + $0x20] sm:$0xf]
    %v174 = vld [vmem:[%s164 + $0x24] sm:$0xf]
    %v175 = vld [vmem:[%s164 + $0x28] sm:$0xf]
    %v176 = vld [vmem:[%s164 + $0x2c] sm:$0xf]
    %v177 = vld [vmem:[%s164 + $0x30] sm:$0xf]
    %v178 = vld [vmem:[%s164 + $0x34] sm:$0xf]
    %v179 = vld [vmem:[%s164 + $0x38] sm:$0xf]
    %v180 = vld [vmem:[%s164 + $0x3c] sm:$0xf]
    %v197 = vunpack.c.l.b16 %v165
    %v198 = vunpack.c.l.b16 %v166
    %v199 = vunpack.c.l.b16 %v167
    %v200 = vunpack.c.l.b16 %v168
    %v201 = vunpack.c.l.b16 %v169
    %v202 = vunpack.c.l.b16 %v170
    %v203 = vunpack.c.l.b16 %v171
    %v204 = vunpack.c.l.b16 %v172
    %v205 = vunpack.c.l.b16 %v173
    %v206 = vunpack.c.l.b16 %v174
    %v207 = vunpack.c.l.b16 %v175
    %v208 = vunpack.c.l.b16 %v176
    %v209 = vunpack.c.l.b16 %v177
    %v210 = vunpack.c.l.b16 %v178
    %v211 = vunpack.c.l.b16 %v179
    %v212 = vunpack.c.l.b16 %v180
    %v213 = vpack.c.b16 %v198, %v197
    %v214 = vpack.c.b16 %v200, %v199
    %v215 = vpack.c.b16 %v202, %v201
    %v216 = vpack.c.b16 %v204, %v203
    %v217 = vpack.c.b16 %v206, %v205
    %v218 = vpack.c.b16 %v208, %v207
    %v219 = vpack.c.b16 %v210, %v209
    %v220 = vpack.c.b16 %v212, %v211
    %229 = vmatprep.subr.bf16.mxu0 0
    %230 = vmatpush1.bf16.msra.mxu0 %v213
    %231 = vmatprep.subr.bf16.mxu0 0
    %232 = vmatpush1.bf16.msra.mxu0 %v214
    %233 = vmatprep.subr.bf16.mxu0 0
    %234 = vmatpush1.bf16.msra.mxu0 %v215
    %235 = vmatprep.subr.bf16.mxu0 0
    %236 = vmatpush1.bf16.msra.mxu0 %v216
    %237 = vmatprep.subr.bf16.mxu0 0
    %238 = vmatpush1.bf16.msra.mxu0 %v217
    %239 = vmatprep.subr.bf16.mxu0 0
    %240 = vmatpush1.bf16.msra.mxu0 %v218
    %241 = vmatprep.subr.bf16.mxu0 0
    %242 = vmatpush1.bf16.msra.mxu0 %v219
    %243 = vmatprep.subr.bf16.mxu0 0
    %244 = vmatpush1.bf16.msra.mxu0 %v220
    %245 = vmatprep.subr.bf16.mxu0 0
    %246 = vmatpush1.bf16.msra.mxu0 0
    %247 = vmatprep.subr.bf16.mxu0 0
    %248 = vmatpush1.bf16.msra.mxu0 0
    %249 = vmatprep.subr.bf16.mxu0 0
    %250 = vmatpush1.bf16.msra.mxu0 0
    %251 = vmatprep.subr.bf16.mxu0 0
    %252 = vmatpush1.bf16.msra.mxu0 0
    %253 = vmatprep.subr.bf16.mxu0 0
    %254 = vmatpush1.bf16.msra.mxu0 0
    %255 = vmatprep.subr.bf16.mxu0 0
    %256 = vmatpush1.bf16.msra.mxu0 0
    %257 = vmatprep.subr.bf16.mxu0 0
    %258 = vmatpush1.bf16.msra.mxu0 0
    %259 = vmatprep.subr.bf16.mxu0 0
    %260 = vmatpush1.bf16.msra.mxu0 0
    %261 = vmatprep.mubr.bf16.mxu0 0
    %262 = vmatmul.mubr.bf16.gmra.mrb[0].mxu0 %v163
    %v263 = vpop.f32.mrb[0].mxu0
    %v264 = vadd.f32 0.0, %v263
    %v265 = vpop.f32.mrb[0].mxu0
    %v266 = vpop.f32.mrb[0].mxu0
    %v267 = vpop.f32.mrb[0].mxu0
    %268 = vdwg.mxu0
    %v269 = vtanh.pop %v264
    %v270 = vsub.f32 %v162, %v269
    %v271 = vpack.c.bf16 %v270, %v270
    %s272 = scalar_lea.vmem [#allocation5], 128
    %v273 = vld [vmem:[%s272] sm:$0xf]
    %v274 = vld [vmem:[%s272 + $0x4] sm:$0xf]
    %v275 = vld [vmem:[%s272 + $0x8] sm:$0xf]
    %v276 = vld [vmem:[%s272 + $0xc] sm:$0xf]
    %v277 = vld [vmem:[%s272 + $0x10] sm:$0xf]
    %v278 = vld [vmem:[%s272 + $0x14] sm:$0xf]
    %v279 = vld [vmem:[%s272 + $0x18] sm:$0xf]
    %v280 = vld [vmem:[%s272 + $0x1c] sm:$0xf]
    %v281 = vld [vmem:[%s272 + $0x20] sm:$0xf]
    %v282 = vld [vmem:[%s272 + $0x24] sm:$0xf]
    %v283 = vld [vmem:[%s272 + $0x28] sm:$0xf]
    %v284 = vld [vmem:[%s272 + $0x2c] sm:$0xf]
    %v285 = vld [vmem:[%s272 + $0x30] sm:$0xf]
    %v286 = vld [vmem:[%s272 + $0x34] sm:$0xf]
    %v287 = vld [vmem:[%s272 + $0x38] sm:$0xf]
    %v288 = vld [vmem:[%s272 + $0x3c] sm:$0xf]
    %v305 = vunpack.c.l.b16 %v273
    %v306 = vunpack.c.l.b16 %v274
    %v307 = vunpack.c.l.b16 %v275
    %v308 = vunpack.c.l.b16 %v276
    %v309 = vunpack.c.l.b16 %v277
    %v310 = vunpack.c.l.b16 %v278
    %v311 = vunpack.c.l.b16 %v279
    %v312 = vunpack.c.l.b16 %v280
    %v313 = vunpack.c.l.b16 %v281
    %v314 = vunpack.c.l.b16 %v282
    %v315 = vunpack.c.l.b16 %v283
    %v316 = vunpack.c.l.b16 %v284
    %v317 = vunpack.c.l.b16 %v285
    %v318 = vunpack.c.l.b16 %v286
    %v319 = vunpack.c.l.b16 %v287
    %v320 = vunpack.c.l.b16 %v288
    %v321 = vpack.c.b16 %v306, %v305
    %v322 = vpack.c.b16 %v308, %v307
    %v323 = vpack.c.b16 %v310, %v309
    %v324 = vpack.c.b16 %v312, %v311
    %v325 = vpack.c.b16 %v314, %v313
    %v326 = vpack.c.b16 %v316, %v315
    %v327 = vpack.c.b16 %v318, %v317
    %v328 = vpack.c.b16 %v320, %v319
    %337 = vmatprep.subr.bf16.mxu0 0
    %338 = vmatpush1.bf16.msra.mxu0 %v321
    %339 = vmatprep.subr.bf16.mxu0 0
    %340 = vmatpush1.bf16.msra.mxu0 %v322
    %341 = vmatprep.subr.bf16.mxu0 0
    %342 = vmatpush1.bf16.msra.mxu0 %v323
    %343 = vmatprep.subr.bf16.mxu0 0
    %344 = vmatpush1.bf16.msra.mxu0 %v324
    %345 = vmatprep.subr.bf16.mxu0 0
    %346 = vmatpush1.bf16.msra.mxu0 %v325
    %347 = vmatprep.subr.bf16.mxu0 0
    %348 = vmatpush1.bf16.msra.mxu0 %v326
    %349 = vmatprep.subr.bf16.mxu0 0
    %350 = vmatpush1.bf16.msra.mxu0 %v327
    %351 = vmatprep.subr.bf16.mxu0 0
    %352 = vmatpush1.bf16.msra.mxu0 %v328
    %353 = vmatprep.subr.bf16.mxu0 0
    %354 = vmatpush1.bf16.msra.mxu0 0
    %355 = vmatprep.subr.bf16.mxu0 0
    %356 = vmatpush1.bf16.msra.mxu0 0
    %357 = vmatprep.subr.bf16.mxu0 0
    %358 = vmatpush1.bf16.msra.mxu0 0
    %359 = vmatprep.subr.bf16.mxu0 0
    %360 = vmatpush1.bf16.msra.mxu0 0
    %361 = vmatprep.subr.bf16.mxu0 0
    %362 = vmatpush1.bf16.msra.mxu0 0
    %363 = vmatprep.subr.bf16.mxu0 0
    %364 = vmatpush1.bf16.msra.mxu0 0
    %365 = vmatprep.subr.bf16.mxu0 0
    %366 = vmatpush1.bf16.msra.mxu0 0
    %367 = vmatprep.subr.bf16.mxu0 0
    %368 = vmatpush1.bf16.msra.mxu0 0
    %369 = vmatprep.mubr.bf16.mxu0 0
    %370 = vmatmul.mubr.bf16.gmra.mrb[0].mxu0 %v271
    %v371 = vpop.f32.mrb[0].mxu0
    %v372 = vadd.f32 0.0, %v371
    %v373 = vpop.f32.mrb[0].mxu0
    %v374 = vpop.f32.mrb[0].mxu0
    %v375 = vpop.f32.mrb[0].mxu0
    %376 = vdwg.mxu0
    %v377 = vtanh.pop %v372
    %v378 = vsub.f32 %v270, %v377
    %v379 = vpack.c.bf16 %v378, %v378
    %v380 = vld [vmem:[#allocation7] sm:$0xf]
    %v381 = vld [vmem:[#allocation7 + $0x4] sm:$0xf]
    %v382 = vld [vmem:[#allocation7 + $0x8] sm:$0xf]
    %v383 = vld [vmem:[#allocation7 + $0xc] sm:$0xf]
    %v384 = vld [vmem:[#allocation7 + $0x10] sm:$0xf]
    %v385 = vld [vmem:[#allocation7 + $0x14] sm:$0xf]
    %v386 = vld [vmem:[#allocation7 + $0x18] sm:$0xf]
    %v387 = vld [vmem:[#allocation7 + $0x1c] sm:$0xf]
    %v388 = vld [vmem:[#allocation7 + $0x20] sm:$0xf]
    %v389 = vld [vmem:[#allocation7 + $0x24] sm:$0xf]
    %v390 = vld [vmem:[#allocation7 + $0x28] sm:$0xf]
    %v391 = vld [vmem:[#allocation7 + $0x2c] sm:$0xf]
    %v392 = vld [vmem:[#allocation7 + $0x30] sm:$0xf]
    %v393 = vld [vmem:[#allocation7 + $0x34] sm:$0xf]
    %v394 = vld [vmem:[#allocation7 + $0x38] sm:$0xf]
    %v395 = vld [vmem:[#allocation7 + $0x3c] sm:$0xf]
    %v412 = vunpack.c.l.b16 %v380
    %v413 = vunpack.c.l.b16 %v381
    %v414 = vunpack.c.l.b16 %v382
    %v415 = vunpack.c.l.b16 %v383
    %v416 = vunpack.c.l.b16 %v384
    %v417 = vunpack.c.l.b16 %v385
    %v418 = vunpack.c.l.b16 %v386
    %v419 = vunpack.c.l.b16 %v387
    %v420 = vunpack.c.l.b16 %v388
    %v421 = vunpack.c.l.b16 %v389
    %v422 = vunpack.c.l.b16 %v390
    %v423 = vunpack.c.l.b16 %v391
    %v424 = vunpack.c.l.b16 %v392
    %v425 = vunpack.c.l.b16 %v393
    %v426 = vunpack.c.l.b16 %v394
    %v427 = vunpack.c.l.b16 %v395
    %v428 = vpack.c.b16 %v413, %v412
    %v429 = vpack.c.b16 %v415, %v414
    %v430 = vpack.c.b16 %v417, %v416
    %v431 = vpack.c.b16 %v419, %v418
    %v432 = vpack.c.b16 %v421, %v420
    %v433 = vpack.c.b16 %v423, %v422
    %v434 = vpack.c.b16 %v425, %v424
    %v435 = vpack.c.b16 %v427, %v426
    %444 = vmatprep.subr.bf16.mxu0 0
    %445 = vmatpush1.bf16.msra.mxu0 %v428
    %446 = vmatprep.subr.bf16.mxu0 0
    %447 = vmatpush1.bf16.msra.mxu0 %v429
    %448 = vmatprep.subr.bf16.mxu0 0
    %449 = vmatpush1.bf16.msra.mxu0 %v430
    %450 = vmatprep.subr.bf16.mxu0 0
    %451 = vmatpush1.bf16.msra.mxu0 %v431
    %452 = vmatprep.subr.bf16.mxu0 0
    %453 = vmatpush1.bf16.msra.mxu0 %v432
    %454 = vmatprep.subr.bf16.mxu0 0
    %455 = vmatpush1.bf16.msra.mxu0 %v433
    %456 = vmatprep.subr.bf16.mxu0 0
    %457 = vmatpush1.bf16.msra.mxu0 %v434
    %458 = vmatprep.subr.bf16.mxu0 0
    %459 = vmatpush1.bf16.msra.mxu0 %v435
    %460 = vmatprep.subr.bf16.mxu0 0
    %461 = vmatpush1.bf16.msra.mxu0 0
    %462 = vmatprep.subr.bf16.mxu0 0
    %463 = vmatpush1.bf16.msra.mxu0 0
    %464 = vmatprep.subr.bf16.mxu0 0
    %465 = vmatpush1.bf16.msra.mxu0 0
    %466 = vmatprep.subr.bf16.mxu0 0
    %467 = vmatpush1.bf16.msra.mxu0 0
    %468 = vmatprep.subr.bf16.mxu0 0
    %469 = vmatpush1.bf16.msra.mxu0 0
    %470 = vmatprep.subr.bf16.mxu0 0
    %471 = vmatpush1.bf16.msra.mxu0 0
    %472 = vmatprep.subr.bf16.mxu0 0
    %473 = vmatpush1.bf16.msra.mxu0 0
    %474 = vmatprep.subr.bf16.mxu0 0
    %475 = vmatpush1.bf16.msra.mxu0 0
    %476 = vmatprep.mubr.bf16.mxu0 0
    %477 = vmatmul.mubr.bf16.gmra.mrb[0].mxu0 %v379
    %v478 = vpop.f32.mrb[0].mxu0
    %v479 = vadd.f32 0.0, %v478
    %v480 = vpop.f32.mrb[0].mxu0
    %v481 = vpop.f32.mrb[0].mxu0
    %v482 = vpop.f32.mrb[0].mxu0
    %483 = vdwg.mxu0
    %v484 = vsub.f32 %v55, %v479
    %485 = vst [vmem:[#allocation8] sm:$0xff] %v484
    // Predicated region
    $region26: #{tpu_custom_call.1} parent=1 // pred_check
      _
    $region27: #{tpu_custom_call.1} parent=1 // pred_check_branch
      %487 = sbr.rel (0) target = $region29
    $region28: #{tpu_custom_call.1} parent=1 // pred_region
      %s489 = ssub.s32 128, 128
      %490 = vsyncadd [#allocation4], %s489
      %s492 = sshll.u32 [#allocation8], 4
      %s493 = int_to_ptr.vmem [resolvable:$true] %s492
      %495 = dma.vmem_to_hbm [thread:$0]  %s493, 128, %s3, [#allocation4]
    $region29: #{tpu_custom_call.1} parent=1 // pred_fallthru
      _
    // Predicated region
    $region30: #{tpu_custom_call.1} parent=1 // pred_check
      _
    $region31: #{tpu_custom_call.1} parent=1 // pred_check_branch
      %497 = sbr.rel (0) target = $region33
    $region32: #{tpu_custom_call.1} parent=1 // pred_region
      %498 = dma.done [#allocation4], 128
    $region33: #{tpu_custom_call.1} parent=1 // pred_fallthru
      _
    %499 = vsyncpa [#allocation3], 1
    %500 = vsyncpa [#allocation6], 1
    %501 = vsyncpa [#allocation4], 1

// kernel: tpu_custom_call.1
$region0: #{tpu_custom_call.1}
  #allocation0 [shape = 'u32[]', space=smem, size = 0x4, offset = 0x4, fixed_abs, tag = 'smem constant byte address 0x4 - core index']
  #allocation1 [shape = 'u32[144,128]{1,0:T(1,128)}', space=vmem, size = 0x12000, scoped, tag = 'internal scratch']
  %s0 = inlined_call_operand.hbm [shape: f32[8,128], index: 0, kind: input, shape index: {}]
  %s1 = inlined_call_operand.hbm [shape: bf16[3,128,128], index: 1, kind: input, shape index: {}]
  %s2 = inlined_call_operand.hbm [shape: bf16[128,128], index: 2, kind: input, shape index: {}]
  %s3 = inlined_call_operand.hbm [shape: f32[8,128], index: 3, kind: output, shape index: {}]
  %s4 = sld [smem:[#allocation0]]
  $region34: #{tpu_custom_call.1} parent=0
    _
  %s6 = ssub.s32 1, %s4
  %s7 = scalar_select 0, %s6, %s4
  $region1: #{tpu_custom_call.1} parent=0
    #allocation2 [shape = 'u8[4096]{0}', space=vmem, size = 0x1000, scoped, tag = 'input window, operand 0, single buffered']
    #allocation3 [shape = 's32[1]{0}', space=sflag, size = 0x4, scoped, tag = 'scoped memory for tpu_custom_call.1']
    #allocation4 [shape = 's32[1]{0}', space=sflag, size = 0x4, scoped, tag = 'scoped memory for tpu_custom_call.1']
    #allocation5 [shape = 'u8[98304]{0}', space=vmem, size = 0x18000, scoped, tag = 'input window, operand 1, single buffered']
    #allocation6 [shape = 's32[1]{0}', space=sflag, size = 0x4, scoped, tag = 'scoped memory for tpu_custom_call.1']
    #allocation7 [shape = 'u8[32768]{0}', space=vmem, size = 0x8000, scoped, tag = 'input window, operand 2, single buffered']
    #allocation8 [shape = 'u8[4096]{0}', space=vmem, size = 0x1000, scoped, tag = 'output window, operand 0, single buffered']
    %8 = vsyncpa [#allocation3], 0
    %9 = vsyncpa [#allocation6], 0
    %10 = vsyncpa [#allocation4], 0
    // Predicated region
    $region2: #{tpu_custom_call.1} parent=1 // pred_check
      _
    $region3: #{tpu_custom_call.1} parent=1 // pred_check_branch
      %12 = sbr.rel (0) target = $region5
    $region4: #{tpu_custom_call.1} parent=1 // pred_region
      %s14 = ssub.s32 128, 128
      %15 = vsyncadd [#allocation3], %s14
      %s17 = sshll.u32 [#allocation2], 4
      %s18 = int_to_ptr.vmem [resolvable:$true] %s17
      %20 = dma.hbm_to_vmem [thread:$0]  %s0, 128, %s18, [#allocation3]
    $region5: #{tpu_custom_call.1} parent=1 // pred_fallthru
      _
    // Predicated region
    $region6: #{tpu_custom_call.1} parent=1 // pred_check
      _
    $region7: #{tpu_custom_call.1} parent=1 // pred_check_branch
      %22 = sbr.rel (0) target = $region9
    $region8: #{tpu_custom_call.1} parent=1 // pred_region
      %s24 = ssub.s32 3072, 3072
      %25 = vsyncadd [#allocation6], %s24
      %s26 = sshll.u32 [#allocation5], 4
      %s27 = int_to_ptr.vmem [resolvable:$true] %s26
      %32 = dma.hbm_to_vmem [thread:$0]  %s1, 3072, %s27, [#allocation6], 64, 64, 4
    $region9: #{tpu_custom_call.1} parent=1 // pred_fallthru
      _
    // Predicated region
    $region10: #{tpu_custom_call.1} parent=1 // pred_check
      _
    $region11: #{tpu_custom_call.1} parent=1 // pred_check_branch
      %34 = sbr.rel (0) target = $region13
    $region12: #{tpu_custom_call.1} parent=1 // pred_region
      %s36 = ssub.s32 1024, 1024
      %37 = vsyncadd [#allocation6], %s36
      %s38 = sshll.u32 [#allocation7], 4
      %s39 = int_to_ptr.vmem [resolvable:$true] %s38
      %44 = dma.hbm_to_vmem [thread:$0]  %s2, 1024, %s39, [#allocation6], 64, 64, 4
    $region13: #{tpu_custom_call.1} parent=1 // pred_fallthru
      _
    // Predicated region
    $region14: #{tpu_custom_call.1} parent=1 // pred_check
      _
    $region15: #{tpu_custom_call.1} parent=1 // pred_check_branch
      %46 = sbr.rel (0) target = $region17
    $region16: #{tpu_custom_call.1} parent=1 // pred_region
      %47 = dma.done [#allocation3], 128
    $region17: #{tpu_custom_call.1} parent=1 // pred_fallthru
      _
    // Predicated region
    $region18: #{tpu_custom_call.1} parent=1 // pred_check
      _
    $region19: #{tpu_custom_call.1} parent=1 // pred_check_branch
      %49 = sbr.rel (0) target = $region21
    $region20: #{tpu_custom_call.1} parent=1 // pred_region
      %50 = dma.done [#allocation6], 3072
    $region21: #{tpu_custom_call.1} parent=1 // pred_fallthru
      _
    // Predicated region
    $region22: #{tpu_custom_call.1} parent=1 // pred_check
      _
    $region23: #{tpu_custom_call.1} parent=1 // pred_check_branch
      %52 = sbr.rel (0) target = $region25
    $region24: #{tpu_custom_call.1} parent=1 // pred_region
      %53 = dma.done [#allocation6], 1024
    $region25: #{tpu_custom_call.1} parent=1 // pred_fallthru
      _
    %v55 = vld [vmem:[#allocation2] sm:$0xff]
    %v56 = vpack.c.bf16 %v55, %v55
    %v57 = vld [vmem:[#allocation5] sm:$0xf]
    %v58 = vld [vmem:[#allocation5 + $0x4] sm:$0xf]
    %v59 = vld [vmem:[#allocation5 + $0x8] sm:$0xf]
    %v60 = vld [vmem:[#allocation5 + $0xc] sm:$0xf]
    %v61 = vld [vmem:[#allocation5 + $0x10] sm:$0xf]
    %v62 = vld [vmem:[#allocation5 + $0x14] sm:$0xf]
    %v63 = vld [vmem:[#allocation5 + $0x18] sm:$0xf]
    %v64 = vld [vmem:[#allocation5 + $0x1c] sm:$0xf]
    %v65 = vld [vmem:[#allocation5 + $0x20] sm:$0xf]
    %v66 = vld [vmem:[#allocation5 + $0x24] sm:$0xf]
    %v67 = vld [vmem:[#allocation5 + $0x28] sm:$0xf]
    %v68 = vld [vmem:[#allocation5 + $0x2c] sm:$0xf]
    %v69 = vld [vmem:[#allocation5 + $0x30] sm:$0xf]
    %v70 = vld [vmem:[#allocation5 + $0x34] sm:$0xf]
    %v71 = vld [vmem:[#allocation5 + $0x38] sm:$0xf]
    %v72 = vld [vmem:[#allocation5 + $0x3c] sm:$0xf]
    %v89 = vunpack.c.l.b16 %v57
    %v90 = vunpack.c.l.b16 %v58
    %v91 = vunpack.c.l.b16 %v59
    %v92 = vunpack.c.l.b16 %v60
    %v93 = vunpack.c.l.b16 %v61
    %v94 = vunpack.c.l.b16 %v62
    %v95 = vunpack.c.l.b16 %v63
    %v96 = vunpack.c.l.b16 %v64
    %v97 = vunpack.c.l.b16 %v65
    %v98 = vunpack.c.l.b16 %v66
    %v99 = vunpack.c.l.b16 %v67
    %v100 = vunpack.c.l.b16 %v68
    %v101 = vunpack.c.l.b16 %v69
    %v102 = vunpack.c.l.b16 %v70
    %v103 = vunpack.c.l.b16 %v71
    %v104 = vunpack.c.l.b16 %v72
    %v105 = vpack.c.b16 %v90, %v89
    %v106 = vpack.c.b16 %v92, %v91
    %v107 = vpack.c.b16 %v94, %v93
    %v108 = vpack.c.b16 %v96, %v95
    %v109 = vpack.c.b16 %v98, %v97
    %v110 = vpack.c.b16 %v100, %v99
    %v111 = vpack.c.b16 %v102, %v101
    %v112 = vpack.c.b16 %v104, %v103
    %121 = vmatprep.subr.bf16.mxu0 0
    %122 = vmatpush1.bf16.msra.mxu0 %v105
    %123 = vmatprep.subr.bf16.mxu0 0
    %124 = vmatpush1.bf16.msra.mxu0 %v106
    %125 = vmatprep.subr.bf16.mxu0 0
    %126 = vmatpush1.bf16.msra.mxu0 %v107
    %127 = vmatprep.subr.bf16.mxu0 0
    %128 = vmatpush1.bf16.msra.mxu0 %v108
    %129 = vmatprep.subr.bf16.mxu0 0
    %130 = vmatpush1.bf16.msra.mxu0 %v109
    %131 = vmatprep.subr.bf16.mxu0 0
    %132 = vmatpush1.bf16.msra.mxu0 %v110
    %133 = vmatprep.subr.bf16.mxu0 0
    %134 = vmatpush1.bf16.msra.mxu0 %v111
    %135 = vmatprep.subr.bf16.mxu0 0
    %136 = vmatpush1.bf16.msra.mxu0 %v112
    %137 = vmatprep.subr.bf16.mxu0 0
    %138 = vmatpush1.bf16.msra.mxu0 0
    %139 = vmatprep.subr.bf16.mxu0 0
    %140 = vmatpush1.bf16.msra.mxu0 0
    %141 = vmatprep.subr.bf16.mxu0 0
    %142 = vmatpush1.bf16.msra.mxu0 0
    %143 = vmatprep.subr.bf16.mxu0 0
    %144 = vmatpush1.bf16.msra.mxu0 0
    %145 = vmatprep.subr.bf16.mxu0 0
    %146 = vmatpush1.bf16.msra.mxu0 0
    %147 = vmatprep.subr.bf16.mxu0 0
    %148 = vmatpush1.bf16.msra.mxu0 0
    %149 = vmatprep.subr.bf16.mxu0 0
    %150 = vmatpush1.bf16.msra.mxu0 0
    %151 = vmatprep.subr.bf16.mxu0 0
    %152 = vmatpush1.bf16.msra.mxu0 0
    %153 = vmatprep.mubr.bf16.mxu0 0
    %154 = vmatmul.mubr.bf16.gmra.mrb[0].mxu0 %v56
    %v155 = vpop.f32.mrb[0].mxu0
    %v156 = vadd.f32 0.0, %v155
    %v157 = vpop.f32.mrb[0].mxu0
    %v158 = vpop.f32.mrb[0].mxu0
    %v159 = vpop.f32.mrb[0].mxu0
    %160 = vdwg.mxu0
    %v161 = vtanh.pop %v156
    %v162 = vsub.f32 %v55, %v161
    %v163 = vpack.c.bf16 %v162, %v162
    %s164 = scalar_lea.vmem [#allocation5], 64
    %v165 = vld [vmem:[%s164] sm:$0xf]
    %v166 = vld [vmem:[%s164 + $0x4] sm:$0xf]
    %v167 = vld [vmem:[%s164 + $0x8] sm:$0xf]
    %v168 = vld [vmem:[%s164 + $0xc] sm:$0xf]
    %v169 = vld [vmem:[%s164 + $0x10] sm:$0xf]
    %v170 = vld [vmem:[%s164 + $0x14] sm:$0xf]
    %v171 = vld [vmem:[%s164 + $0x18] sm:$0xf]
    %v172 = vld [vmem:[%s164 + $0x1c] sm:$0xf]
    %v173 = vld [vmem:[%s164 + $0x20] sm:$0xf]
    %v174 = vld [vmem:[%s164 + $0x24] sm:$0xf]
    %v175 = vld [vmem:[%s164 + $0x28] sm:$0xf]
    %v176 = vld [vmem:[%s164 + $0x2c] sm:$0xf]
    %v177 = vld [vmem:[%s164 + $0x30] sm:$0xf]
    %v178 = vld [vmem:[%s164 + $0x34] sm:$0xf]
    %v179 = vld [vmem:[%s164 + $0x38] sm:$0xf]
    %v180 = vld [vmem:[%s164 + $0x3c] sm:$0xf]
    %v197 = vunpack.c.l.b16 %v165
    %v198 = vunpack.c.l.b16 %v166
    %v199 = vunpack.c.l.b16 %v167
    %v200 = vunpack.c.l.b16 %v168
    %v201 = vunpack.c.l.b16 %v169
    %v202 = vunpack.c.l.b16 %v170
    %v203 = vunpack.c.l.b16 %v171
    %v204 = vunpack.c.l.b16 %v172
    %v205 = vunpack.c.l.b16 %v173
    %v206 = vunpack.c.l.b16 %v174
    %v207 = vunpack.c.l.b16 %v175
    %v208 = vunpack.c.l.b16 %v176
    %v209 = vunpack.c.l.b16 %v177
    %v210 = vunpack.c.l.b16 %v178
    %v211 = vunpack.c.l.b16 %v179
    %v212 = vunpack.c.l.b16 %v180
    %v213 = vpack.c.b16 %v198, %v197
    %v214 = vpack.c.b16 %v200, %v199
    %v215 = vpack.c.b16 %v202, %v201
    %v216 = vpack.c.b16 %v204, %v203
    %v217 = vpack.c.b16 %v206, %v205
    %v218 = vpack.c.b16 %v208, %v207
    %v219 = vpack.c.b16 %v210, %v209
    %v220 = vpack.c.b16 %v212, %v211
    %229 = vmatprep.subr.bf16.mxu0 0
    %230 = vmatpush1.bf16.msra.mxu0 %v213
    %231 = vmatprep.subr.bf16.mxu0 0
    %232 = vmatpush1.bf16.msra.mxu0 %v214
    %233 = vmatprep.subr.bf16.mxu0 0
    %234 = vmatpush1.bf16.msra.mxu0 %v215
    %235 = vmatprep.subr.bf16.mxu0 0
    %236 = vmatpush1.bf16.msra.mxu0 %v216
    %237 = vmatprep.subr.bf16.mxu0 0
    %238 = vmatpush1.bf16.msra.mxu0 %v217
    %239 = vmatprep.subr.bf16.mxu0 0
    %240 = vmatpush1.bf16.msra.mxu0 %v218
    %241 = vmatprep.subr.bf16.mxu0 0
    %242 = vmatpush1.bf16.msra.mxu0 %v219
    %243 = vmatprep.subr.bf16.mxu0 0
    %244 = vmatpush1.bf16.msra.mxu0 %v220
    %245 = vmatprep.subr.bf16.mxu0 0
    %246 = vmatpush1.bf16.msra.mxu0 0
    %247 = vmatprep.subr.bf16.mxu0 0
    %248 = vmatpush1.bf16.msra.mxu0 0
    %249 = vmatprep.subr.bf16.mxu0 0
    %250 = vmatpush1.bf16.msra.mxu0 0
    %251 = vmatprep.subr.bf16.mxu0 0
    %252 = vmatpush1.bf16.msra.mxu0 0
    %253 = vmatprep.subr.bf16.mxu0 0
    %254 = vmatpush1.bf16.msra.mxu0 0
    %255 = vmatprep.subr.bf16.mxu0 0
    %256 = vmatpush1.bf16.msra.mxu0 0
    %257 = vmatprep.subr.bf16.mxu0 0
    %258 = vmatpush1.bf16.msra.mxu0 0
    %259 = vmatprep.subr.bf16.mxu0 0
    %260 = vmatpush1.bf16.msra.mxu0 0
    %261 = vmatprep.mubr.bf16.mxu0 0
    %262 = vmatmul.mubr.bf16.gmra.mrb[0].mxu0 %v163
    %v263 = vpop.f32.mrb[0].mxu0
    %v264 = vadd.f32 0.0, %v263
    %v265 = vpop.f32.mrb[0].mxu0
    %v266 = vpop.f32.mrb[0].mxu0
    %v267 = vpop.f32.mrb[0].mxu0
    %268 = vdwg.mxu0
    %v269 = vtanh.pop %v264
    %v270 = vsub.f32 %v162, %v269
    %v271 = vpack.c.bf16 %v270, %v270
    %s272 = scalar_lea.vmem [#allocation5], 128
    %v273 = vld [vmem:[%s272] sm:$0xf]
    %v274 = vld [vmem:[%s272 + $0x4] sm:$0xf]
    %v275 = vld [vmem:[%s272 + $0x8] sm:$0xf]
    %v276 = vld [vmem:[%s272 + $0xc] sm:$0xf]
    %v277 = vld [vmem:[%s272 + $0x10] sm:$0xf]
    %v278 = vld [vmem:[%s272 + $0x14] sm:$0xf]
    %v279 = vld [vmem:[%s272 + $0x18] sm:$0xf]
    %v280 = vld [vmem:[%s272 + $0x1c] sm:$0xf]
    %v281 = vld [vmem:[%s272 + $0x20] sm:$0xf]
    %v282 = vld [vmem:[%s272 + $0x24] sm:$0xf]
    %v283 = vld [vmem:[%s272 + $0x28] sm:$0xf]
    %v284 = vld [vmem:[%s272 + $0x2c] sm:$0xf]
    %v285 = vld [vmem:[%s272 + $0x30] sm:$0xf]
    %v286 = vld [vmem:[%s272 + $0x34] sm:$0xf]
    %v287 = vld [vmem:[%s272 + $0x38] sm:$0xf]
    %v288 = vld [vmem:[%s272 + $0x3c] sm:$0xf]
    %v305 = vunpack.c.l.b16 %v273
    %v306 = vunpack.c.l.b16 %v274
    %v307 = vunpack.c.l.b16 %v275
    %v308 = vunpack.c.l.b16 %v276
    %v309 = vunpack.c.l.b16 %v277
    %v310 = vunpack.c.l.b16 %v278
    %v311 = vunpack.c.l.b16 %v279
    %v312 = vunpack.c.l.b16 %v280
    %v313 = vunpack.c.l.b16 %v281
    %v314 = vunpack.c.l.b16 %v282
    %v315 = vunpack.c.l.b16 %v283
    %v316 = vunpack.c.l.b16 %v284
    %v317 = vunpack.c.l.b16 %v285
    %v318 = vunpack.c.l.b16 %v286
    %v319 = vunpack.c.l.b16 %v287
    %v320 = vunpack.c.l.b16 %v288
    %v321 = vpack.c.b16 %v306, %v305
    %v322 = vpack.c.b16 %v308, %v307
    %v323 = vpack.c.b16 %v310, %v309
    %v324 = vpack.c.b16 %v312, %v311
    %v325 = vpack.c.b16 %v314, %v313
    %v326 = vpack.c.b16 %v316, %v315
    %v327 = vpack.c.b16 %v318, %v317
    %v328 = vpack.c.b16 %v320, %v319
    %337 = vmatprep.subr.bf16.mxu0 0
    %338 = vmatpush1.bf16.msra.mxu0 %v321
    %339 = vmatprep.subr.bf16.mxu0 0
    %340 = vmatpush1.bf16.msra.mxu0 %v322
    %341 = vmatprep.subr.bf16.mxu0 0
    %342 = vmatpush1.bf16.msra.mxu0 %v323
    %343 = vmatprep.subr.bf16.mxu0 0
    %344 = vmatpush1.bf16.msra.mxu0 %v324
    %345 = vmatprep.subr.bf16.mxu0 0
    %346 = vmatpush1.bf16.msra.mxu0 %v325
    %347 = vmatprep.subr.bf16.mxu0 0
    %348 = vmatpush1.bf16.msra.mxu0 %v326
    %349 = vmatprep.subr.bf16.mxu0 0
    %350 = vmatpush1.bf16.msra.mxu0 %v327
    %351 = vmatprep.subr.bf16.mxu0 0
    %352 = vmatpush1.bf16.msra.mxu0 %v328
    %353 = vmatprep.subr.bf16.mxu0 0
    %354 = vmatpush1.bf16.msra.mxu0 0
    %355 = vmatprep.subr.bf16.mxu0 0
    %356 = vmatpush1.bf16.msra.mxu0 0
    %357 = vmatprep.subr.bf16.mxu0 0
    %358 = vmatpush1.bf16.msra.mxu0 0
    %359 = vmatprep.subr.bf16.mxu0 0
    %360 = vmatpush1.bf16.msra.mxu0 0
    %361 = vmatprep.subr.bf16.mxu0 0
    %362 = vmatpush1.bf16.msra.mxu0 0
    %363 = vmatprep.subr.bf16.mxu0 0
    %364 = vmatpush1.bf16.msra.mxu0 0
    %365 = vmatprep.subr.bf16.mxu0 0
    %366 = vmatpush1.bf16.msra.mxu0 0
    %367 = vmatprep.subr.bf16.mxu0 0
    %368 = vmatpush1.bf16.msra.mxu0 0
    %369 = vmatprep.mubr.bf16.mxu0 0
    %370 = vmatmul.mubr.bf16.gmra.mrb[0].mxu0 %v271
    %v371 = vpop.f32.mrb[0].mxu0
    %v372 = vadd.f32 0.0, %v371
    %v373 = vpop.f32.mrb[0].mxu0
    %v374 = vpop.f32.mrb[0].mxu0
    %v375 = vpop.f32.mrb[0].mxu0
    %376 = vdwg.mxu0
    %v377 = vtanh.pop %v372
    %v378 = vsub.f32 %v270, %v377
    %v379 = vpack.c.bf16 %v378, %v378
    %v380 = vld [vmem:[#allocation7] sm:$0xf]
    %v381 = vld [vmem:[#allocation7 + $0x4] sm:$0xf]
    %v382 = vld [vmem:[#allocation7 + $0x8] sm:$0xf]
    %v383 = vld [vmem:[#allocation7 + $0xc] sm:$0xf]
    %v384 = vld [vmem:[#allocation7 + $0x10] sm:$0xf]
    %v385 = vld [vmem:[#allocation7 + $0x14] sm:$0xf]
    %v386 = vld [vmem:[#allocation7 + $0x18] sm:$0xf]
    %v387 = vld [vmem:[#allocation7 + $0x1c] sm:$0xf]
    %v388 = vld [vmem:[#allocation7 + $0x20] sm:$0xf]
    %v389 = vld [vmem:[#allocation7 + $0x24] sm:$0xf]
    %v390 = vld [vmem:[#allocation7 + $0x28] sm:$0xf]
    %v391 = vld [vmem:[#allocation7 + $0x2c] sm:$0xf]
    %v392 = vld [vmem:[#allocation7 + $0x30] sm:$0xf]
    %v393 = vld [vmem:[#allocation7 + $0x34] sm:$0xf]
    %v394 = vld [vmem:[#allocation7 + $0x38] sm:$0xf]
    %v395 = vld [vmem:[#allocation7 + $0x3c] sm:$0xf]
    %v412 = vunpack.c.l.b16 %v380
    %v413 = vunpack.c.l.b16 %v381
    %v414 = vunpack.c.l.b16 %v382
    %v415 = vunpack.c.l.b16 %v383
    %v416 = vunpack.c.l.b16 %v384
    %v417 = vunpack.c.l.b16 %v385
    %v418 = vunpack.c.l.b16 %v386
    %v419 = vunpack.c.l.b16 %v387
    %v420 = vunpack.c.l.b16 %v388
    %v421 = vunpack.c.l.b16 %v389
    %v422 = vunpack.c.l.b16 %v390
    %v423 = vunpack.c.l.b16 %v391
    %v424 = vunpack.c.l.b16 %v392
    %v425 = vunpack.c.l.b16 %v393
    %v426 = vunpack.c.l.b16 %v394
    %v427 = vunpack.c.l.b16 %v395
    %v428 = vpack.c.b16 %v413, %v412
    %v429 = vpack.c.b16 %v415, %v414
    %v430 = vpack.c.b16 %v417, %v416
    %v431 = vpack.c.b16 %v419, %v418
    %v432 = vpack.c.b16 %v421, %v420
    %v433 = vpack.c.b16 %v423, %v422
    %v434 = vpack.c.b16 %v425, %v424
    %v435 = vpack.c.b16 %v427, %v426
    %444 = vmatprep.subr.bf16.mxu0 0
    %445 = vmatpush1.bf16.msra.mxu0 %v428
    %446 = vmatprep.subr.bf16.mxu0 0
    %447 = vmatpush1.bf16.msra.mxu0 %v429
    %448 = vmatprep.subr.bf16.mxu0 0
    %449 = vmatpush1.bf16.msra.mxu0 %v430
    %450 = vmatprep.subr.bf16.mxu0 0
    %451 = vmatpush1.bf16.msra.mxu0 %v431
    %452 = vmatprep.subr.bf16.mxu0 0
    %453 = vmatpush1.bf16.msra.mxu0 %v432
    %454 = vmatprep.subr.bf16.mxu0 0
    %455 = vmatpush1.bf16.msra.mxu0 %v433
    %456 = vmatprep.subr.bf16.mxu0 0
    %457 = vmatpush1.bf16.msra.mxu0 %v434
    %458 = vmatprep.subr.bf16.mxu0 0
    %459 = vmatpush1.bf16.msra.mxu0 %v435
    %460 = vmatprep.subr.bf16.mxu0 0
    %461 = vmatpush1.bf16.msra.mxu0 0
    %462 = vmatprep.subr.bf16.mxu0 0
    %463 = vmatpush1.bf16.msra.mxu0 0
    %464 = vmatprep.subr.bf16.mxu0 0
    %465 = vmatpush1.bf16.msra.mxu0 0
    %466 = vmatprep.subr.bf16.mxu0 0
    %467 = vmatpush1.bf16.msra.mxu0 0
    %468 = vmatprep.subr.bf16.mxu0 0
    %469 = vmatpush1.bf16.msra.mxu0 0
    %470 = vmatprep.subr.bf16.mxu0 0
    %471 = vmatpush1.bf16.msra.mxu0 0
    %472 = vmatprep.subr.bf16.mxu0 0
    %473 = vmatpush1.bf16.msra.mxu0 0
    %474 = vmatprep.subr.bf16.mxu0 0
    %475 = vmatpush1.bf16.msra.mxu0 0
    %476 = vmatprep.mubr.bf16.mxu0 0
    %477 = vmatmul.mubr.bf16.gmra.mrb[0].mxu0 %v379
    %v478 = vpop.f32.mrb[0].mxu0
    %v479 = vadd.f32 0.0, %v478
    %v480 = vpop.f32.mrb[0].mxu0
    %v481 = vpop.f32.mrb[0].mxu0
    %v482 = vpop.f32.mrb[0].mxu0
    %483 = vdwg.mxu0
    %v484 = vsub.f32 %v55, %v479
    %485 = vst [vmem:[#allocation8] sm:$0xff] %v484
    // Predicated region
    $region26: #{tpu_custom_call.1} parent=1 // pred_check
      _
    $region27: #{tpu_custom_call.1} parent=1 // pred_check_branch
      %487 = sbr.rel (0) target = $region29
    $region28: #{tpu_custom_call.1} parent=1 // pred_region
      %s489 = ssub.s32 128, 128
      %490 = vsyncadd [#allocation4], %s489
      %s492 = sshll.u32 [#allocation8], 4
      %s493 = int_to_ptr.vmem [resolvable:$true] %s492
      %495 = dma.vmem_to_hbm [thread:$0]  %s493, 128, %s3, [#allocation4]
    $region29: #{tpu_custom_call.1} parent=1 // pred_fallthru
      _
    // Predicated region
    $region30: #{tpu_custom_call.1} parent=1 // pred_check
      _
    $region31: #{tpu_custom_call.1} parent=1 // pred_check_branch
      %497 = sbr.rel (0) target = $region33
    $region32: #{tpu_custom_call.1} parent=1 // pred_region
      %498 = dma.done [#allocation4], 128
    $region33: #{tpu_custom_call.1} parent=1 // pred_fallthru
      _
    %499 = vsyncpa [#allocation3], 1
    %500 = vsyncpa [#allocation6], 1
    %501 = vsyncpa [#allocation4], 1

</llo_original>
